<compile_context>
chip_gen: v7x
topology: tpu7x:2x2x1
jax: 0.10.0
libtpu: 0.0.40
codegen_flags: <defaults>
</compile_context>

<pallas_src>
import functools

import jax
import jax.numpy as jnp
from jax.experimental import pallas as pl
from jax.experimental.pallas import tpu as pltpu


# ----------------------------- helpers -------------------------------------- #

def _round_up(n, m):
    return ((n + m - 1) // m) * m


def _physical_vmem_bytes():
    """Per-TensorCore VMEM capacity (128 MiB v5e/v6e, 64 MiB v7x)."""
    try:
        return int(pltpu.get_tpu_info().vmem_capacity_bytes)
    except Exception:
        return 64 * 1024 * 1024  # conservative fallback (v7x-sized)


def _pick_hw_tile(hw, c, itemsize, max_block_bytes):
    """Largest multiple-of-128 lane tile with C * t * itemsize <= max_block_bytes.

    Uses a cdiv grid with in-kernel tail masking, so the tile does NOT need to
    divide hw (avoids the old 128-lane fallback for awkward HW sizes).
    """
    hw128 = _round_up(hw, 128)
    max_lanes = max(128, ((max_block_bytes // max(1, c * itemsize)) // 128) * 128)
    return min(hw128, max_lanes)


def _excitation(mean_f32, w_fc1, w_fc2):
    """Tiny SE MLP (plain JAX): fc1 -> exact GELU -> fc2 -> sigmoid."""
    g = jnp.dot(mean_f32, w_fc1.T.astype(jnp.float32),
                precision=jax.lax.Precision.HIGHEST)
    g = jax.nn.gelu(g, approximate=False)          # PyTorch nn.GELU() default (erf)
    g = jnp.dot(g, w_fc2.T.astype(jnp.float32),
                precision=jax.lax.Precision.HIGHEST)
    return jax.nn.sigmoid(g)


# ----------------------------- kernels --------------------------------------- #

def _se_fused_kernel(x_ref, w1t_ref, w2t_ref, o_ref, *, inv_hw):
    # x_ref : (1, C, HW) resident batch slab; w1t_ref: (C, HID); w2t_ref: (HID, C)
    x = x_ref[...]
    mean = jnp.sum(x, axis=-1, dtype=jnp.float32) * inv_hw          # (1, C) f32
    g = jnp.dot(mean, w1t_ref[...].astype(jnp.float32),
                preferred_element_type=jnp.float32,
                precision=jax.lax.Precision.HIGHEST)                # (1, HID)
    g = jax.nn.gelu(g, approximate=False)                           # exact (erf) GELU
    g = jnp.dot(g, w2t_ref[...].astype(jnp.float32),
                preferred_element_type=jnp.float32,
                precision=jax.lax.Precision.HIGHEST)                # (1, C)
    gate = jax.nn.sigmoid(g).astype(x.dtype)                        # (1, C)
    o_ref[...] = x * gate[:, :, None]


def _se_reduce_kernel(x_ref, sum_ref, *, hw, t_hw, mask_tail):
    # x_ref  : (1, C, t_hw) tile; sum_ref: (1, C, 1) f32 accumulator resident over ti
    ti = pl.program_id(1)

    @pl.when(ti == 0)
    def _():
        sum_ref[...] = jnp.zeros_like(sum_ref)

    x = x_ref[...]
    if mask_tail:
        # cdiv grid: the edge tile's out-of-range lanes contain garbage -> zero them.
        lane = jax.lax.broadcasted_iota(jnp.int32, x.shape, 2)
        x = jnp.where(lane + ti * t_hw < hw, x, jnp.zeros_like(x))
    sum_ref[...] += jnp.sum(x, axis=-1, keepdims=True, dtype=jnp.float32)


def _se_scale_kernel(x_ref, gate_ref, o_ref):
    # Out-of-range lanes of the edge tile are clipped by Pallas on writeback.
    o_ref[...] = x_ref[...] * gate_ref[...]


# ----------------------------- wrappers --------------------------------------- #

def _se_fused(x_flat, w_fc1, w_fc2, hw, *, vmem_limit):
    b, c, _ = x_flat.shape
    hid = w_fc1.shape[0]
    kernel = functools.partial(_se_fused_kernel, inv_hw=1.0 / hw)
    return pl.pallas_call(
        kernel,
        out_shape=jax.ShapeDtypeStruct((b, c, hw), x_flat.dtype),
        grid=(b,),
        in_specs=[
            pl.BlockSpec((1, c, hw), lambda bi: (bi, 0, 0)),
            pl.BlockSpec((c, hid), lambda bi: (0, 0)),
            pl.BlockSpec((hid, c), lambda bi: (0, 0)),
        ],
        out_specs=pl.BlockSpec((1, c, hw), lambda bi: (bi, 0, 0)),
        compiler_params=pltpu.CompilerParams(
            dimension_semantics=("parallel",),
            vmem_limit_bytes=vmem_limit,
        ),
    )(x_flat, w_fc1.T, w_fc2.T)


def _se_two_pass(x_flat, w_fc1, w_fc2, hw, *, max_block_bytes=4 * 1024 * 1024):
    b, c, _ = x_flat.shape
    itemsize = jnp.dtype(x_flat.dtype).itemsize
    t_hw = _pick_hw_tile(hw, c, itemsize, max_block_bytes)
    n_t = pl.cdiv(hw, t_hw)
    vmem_limit = 32 * 1024 * 1024  # lifts v5e's 16 MiB scoped default; safe on v7x

    reduce_kernel = functools.partial(
        _se_reduce_kernel, hw=hw, t_hw=t_hw, mask_tail=(hw % t_hw) != 0)

    # ---- pass 1: per-(batch, channel) spatial sum, f32 accumulation ----------
    sums = pl.pallas_call(
        reduce_kernel,
        out_shape=jax.ShapeDtypeStruct((b, c, 1), jnp.float32),
        grid=(b, n_t),
        in_specs=[pl.BlockSpec((1, c, t_hw), lambda bi, ti: (bi, 0, ti))],
        out_specs=pl.BlockSpec((1, c, 1), lambda bi, ti: (bi, 0, 0)),
        compiler_params=pltpu.CompilerParams(
            dimension_semantics=("parallel", "arbitrary"),
            vmem_limit_bytes=vmem_limit,
        ),
    )(x_flat)

    # ---- tiny excitation MLP in plain JAX (hoisted out of the hot kernels) ----
    mean = sums[:, :, 0] * (1.0 / hw)                                 # (B, C) f32
    gate = _excitation(mean, w_fc1, w_fc2).astype(x_flat.dtype)[:, :, None]

    # ---- pass 2: stream x and apply the channel gate (true output extent) -----
    out_flat = pl.pallas_call(
        _se_scale_kernel,
        out_shape=jax.ShapeDtypeStruct((b, c, hw), x_flat.dtype),
        grid=(b, n_t),
        in_specs=[
            pl.BlockSpec((1, c, t_hw), lambda bi, ti: (bi, 0, ti)),
            pl.BlockSpec((1, c, 1), lambda bi, ti: (bi, 0, 0)),
        ],
        out_specs=pl.BlockSpec((1, c, t_hw), lambda bi, ti: (bi, 0, ti)),
        compiler_params=pltpu.CompilerParams(
            dimension_semantics=("parallel", "parallel"),
            vmem_limit_bytes=vmem_limit,
        ),
    )(x_flat, gate)
    return out_flat


def se_forward(x_nchw, w_fc1, w_fc2, *, force_two_pass=False):
    """SE forward pass.

    Args:
      x_nchw: (B, C, H, W) input (PyTorch NCHW layout).
      w_fc1 : (HID, C)  -- nn.Linear(oup, hid, bias=False).weight layout.
      w_fc2 : (C, HID)  -- nn.Linear(hid, oup, bias=False).weight layout.
    Returns:
      (B, C, H, W) output, same dtype as x.
    """
    b, c, h, w = x_nchw.shape
    hw = h * w
    x_flat = x_nchw.reshape(b, c, hw)
    itemsize = jnp.dtype(x_nchw.dtype).itemsize

    phys = _physical_vmem_bytes()
    # Per-batch slab as actually allocated in VMEM (sublanes padded to 8, lanes to 128).
    slab_bytes = _round_up(c, 8) * _round_up(hw, 128) * itemsize
    # Fused path keeps ~4 slabs live (double-buffered in + out) plus headroom for
    # compiler scratch / weights.  ~12 MiB ceiling on v7x, capped at 24 MiB elsewhere.
    slab_limit = min(24 << 20, max(0, phys - (16 << 20)) // 4)

    if (not force_two_pass) and slab_bytes <= slab_limit:
        vmem_limit = min(phys - (8 << 20), max(32 << 20, 4 * slab_bytes + (8 << 20)))
        try:
            # Eager call: Mosaic lowering/compile errors surface here and we fall
            # back to the (always-supported) two-pass path.
            out_flat = jax.block_until_ready(
                _se_fused(x_flat, w_fc1, w_fc2, hw, vmem_limit=vmem_limit))
            return out_flat.reshape(b, c, h, w)
        except Exception:
            pass  # e.g. exact-GELU (erf) or tiny-matmul lowering unavailable

    out_flat = _se_two_pass(x_flat, w_fc1, w_fc2, hw)
    return out_flat.reshape(b, c, h, w)


def se_reference(x_nchw, w_fc1, w_fc2):
    """Pure-JAX reference mirroring the PyTorch SE module."""
    y = jnp.mean(x_nchw.astype(jnp.float32), axis=(2, 3))            # (B, C)
    y = _excitation(y, w_fc1, w_fc2)
    return x_nchw * y.astype(x_nchw.dtype)[:, :, None, None]


if __name__ == "__main__":
    # EDSR(n_feats=64) -> FeatExtract(dim=64) -> SE(inp=64, oup=64, expansion=0.25)
    dim = 64
    hid = int(dim * 0.25)          # 16
    B, C, H, W = 2, dim, 16, 16    # H*W = 256 (lane aligned) -> fused path

    key = jax.random.PRNGKey(0)
    kx, k1, k2, kx2 = jax.random.split(key, 4)
    x = jax.random.normal(kx, (B, C, H, W), dtype=jnp.float32)
    # Shapes follow nn.Linear(oup, hid, bias=False) / nn.Linear(hid, oup, bias=False).
    w_fc1 = jax.random.normal(k1, (hid, dim), dtype=jnp.float32) * 0.1
    w_fc2 = jax.random.normal(k2, (dim, hid), dtype=jnp.float32) * 0.1

    out = jax.block_until_ready(se_forward(x, w_fc1, w_fc2))
    ref = se_reference(x, w_fc1, w_fc2)
    assert out.shape == (B, C, H, W)
    # Tolerance leaves slack for MXU accumulation-order / multi-pass f32 differences
    # in the tiny in-kernel MLP; real errors would be orders of magnitude larger.
    assert jnp.allclose(out, ref, atol=2e-4, rtol=2e-4), "fused path mismatch"

    # Exercise the tiled two-pass path with a ragged (non-multiple-of-128) H*W:
    # cdiv grid + in-kernel tail masking + clipped edge writeback (no host pad/slice).
    x2 = jax.random.normal(kx2, (B, C, 15, 15), dtype=jnp.float32)   # H*W = 225
    out2 = jax.block_until_ready(se_forward(x2, w_fc1, w_fc2, force_two_pass=True))
    ref2 = se_reference(x2, w_fc1, w_fc2)
    assert out2.shape == x2.shape
    assert jnp.allclose(out2, ref2, atol=2e-4, rtol=2e-4), "two-pass path mismatch"

    print("KERNEL_OK")
</pallas_src>

<mosaic_0001>
module attributes {stable_mosaic.version = 11 : i64} {
  func.func @_se_reduce_kernel(%arg0: i32, %arg1: i32, %arg2: memref<1x64x256xf32, #tpu.memory_space<vmem>>, %arg3: memref<1x64x1xf32, #tpu.memory_space<vmem>>) attributes {dimension_semantics = [#tpu.dimension_semantics<parallel>, #tpu.dimension_semantics<arbitrary>], iteration_bounds = array<i64: 2, 1>, scalar_prefetch = 0 : i64, scratch_operands = 0 : i64, tpu.core_type = #tpu.core_type<tc>, window_params = [{transform_indices = @transform_0, window_bounds = array<i64: 1, 64, 256>}, {transform_indices = @transform_1, window_bounds = array<i64: 1, 64, 1>}]} {
    %c0_i32 = arith.constant 0 : i32
    %0 = arith.cmpi eq, %arg1, %c0_i32 : i32
    %1 = arith.extui %0 : i1 to i32
    %c0_i32_0 = arith.constant 0 : i32
    %2 = arith.cmpi ne, %1, %c0_i32_0 : i32
    scf.if %2 {
      %cst_9 = arith.constant 0.000000e+00 : f32
      %9 = vector.broadcast %cst_9 : f32 to vector<1x64x1xf32>
      %c0_10 = arith.constant 0 : index
      %c0_11 = arith.constant 0 : index
      %c0_12 = arith.constant 0 : index
      %10 = vector.load %arg3[%c0_10, %c0_11, %c0_12] : memref<1x64x1xf32, #tpu.memory_space<vmem>>, vector<1x64x1xf32>
      tpu.vector_store %arg3[%c0_10, %c0_11, %c0_12], %9 {strides = array<i32>} : memref<1x64x1xf32, #tpu.memory_space<vmem>>, vector<1x64x1xf32>,
    } else {
    }
    %c0 = arith.constant 0 : index
    %c0_1 = arith.constant 0 : index
    %c0_2 = arith.constant 0 : index
    %3 = vector.load %arg2[%c0, %c0_1, %c0_2] : memref<1x64x256xf32, #tpu.memory_space<vmem>>, vector<1x64x256xf32>
    %c0_3 = arith.constant 0 : index
    %c0_4 = arith.constant 0 : index
    %c0_5 = arith.constant 0 : index
    %4 = vector.load %arg3[%c0_3, %c0_4, %c0_5] : memref<1x64x1xf32, #tpu.memory_space<vmem>>, vector<1x64x1xf32>
    %cst = arith.constant dense<0.000000e+00> : vector<1x64xf32>
    %5 = vector.multi_reduction <add>, %3, %cst [2] : vector<1x64x256xf32> to vector<1x64xf32>
    %6 = vector.shape_cast %5 : vector<1x64xf32> to vector<1x64x1xf32>
    %7 = arith.addf %4, %6 : vector<1x64x1xf32>
    %c0_6 = arith.constant 0 : index
    %c0_7 = arith.constant 0 : index
    %c0_8 = arith.constant 0 : index
    %8 = vector.load %arg3[%c0_6, %c0_7, %c0_8] : memref<1x64x1xf32, #tpu.memory_space<vmem>>, vector<1x64x1xf32>
    tpu.vector_store %arg3[%c0_6, %c0_7, %c0_8], %7 {strides = array<i32>} : memref<1x64x1xf32, #tpu.memory_space<vmem>>, vector<1x64x1xf32>,
    return
  }
  func.func @transform_0(%arg0: i32, %arg1: i32) -> (i32, i32, i32) {
    %c0_i32 = arith.constant 0 : i32
    %c0_i32_0 = arith.constant 0 : i32
    return %arg0, %c0_i32, %arg1 : i32, i32, i32
  }
  func.func @transform_1(%arg0: i32, %arg1: i32) -> (i32, i32, i32) {
    %c0_i32 = arith.constant 0 : i32
    %c0_i32_0 = arith.constant 0 : i32
    %c0_i32_1 = arith.constant 0 : i32
    return %arg0, %c0_i32, %c0_i32_0 : i32, i32, i32
  }
}

</mosaic_0001>

<llo_original>
// kernel: tpu_custom_call.1
$region0: #{tpu_custom_call.1}
  #allocation0 [shape = 'u32[]', space=smem, size = 0x4, offset = 0x4, fixed_abs, tag = 'smem constant byte address 0x4 - core index']
  #allocation1 [shape = 'u32[144,128]{1,0:T(1,128)}', space=vmem, size = 0x12000, scoped, tag = 'internal scratch']
  %s0 = inlined_call_operand.hbm [shape: f32[2,64,256], index: 0, kind: input, shape index: {}]
  %s1 = inlined_call_operand.vmem [shape: f32[2,64,1], index: 1, kind: output, shape index: {}]
  %s2 = sld [smem:[#allocation0]]
  $region45: #{tpu_custom_call.1} parent=0
    _
  %s4 = ssub.s32 1, %s2
  %s5 = scalar_select 0, %s4, %s2
  $region1: #{tpu_custom_call.1} parent=0
    #allocation2 [shape = 'u8[131072]{0}', space=vmem, size = 0x20000, scoped, tag = 'input window, operand 0']
    #allocation3 [shape = 's32[2]{0}', space=sflag, size = 0x8, scoped, tag = 'scoped memory for tpu_custom_call.1']
    %6 = vsyncpa [#allocation3], 0
    %s7 = scalar_lea.sflag [#allocation3], 1
    %8 = vsyncpa %s7, 0
    loop: start=0, step=1, limit=4
    $region2: #{tpu_custom_call.1} parent=1 // loop_pre_header
      _
    $region3: #{tpu_custom_call.1} parent=1 // loop_header
      %s10 = sphi 0, %s14
      %p11 = scmp.ge.s32.totalorder %s10, 4
      %s17 = sphi 0, %s29
      %s18 = sphi 0, %s25
      %s19 = sphi 0, %s17
      %s20 = sphi 0, %s18
      %s21 = sphi 0, %s19
      %s22 = sphi 0, %s20
      %s34 = sphi 0, %s36
      %s37 = sphi 0, %s34
      %s38 = sphi 0, %s37
      %s54 = sphi 0, %s38
      %s60 = sphi 0, %s62
      %s63 = sphi 0, %s60
      %s64 = sphi 0, %s63
      %s80 = sphi 0, %s64
    $region4: #{tpu_custom_call.1} parent=1 // loop_header_branch
      %13 = sbr.rel (%p11) target = $region8
    $region5: #{tpu_custom_call.1} parent=1 // loop_body
      %s15 = ssub.s32 %s10, 1
      %s16 = ssub.s32 %s10, 2
      %s23 = sadd.s32 1, %s18
      %p24 = scmp.ge.s32.totalorder %s23, 1
      %s25 = scalar_select %p24, 0, %s23
      %s26 = sadd.s32 1, %s17
      %s27 = scalar_select %p24, %s26, %s17
      %p28 = scmp.ge.s32.totalorder %s27, 2
      %s29 = scalar_select %p28, 0, %s27
      %s30 = ssub.s32 %s17, %s29
      %s31 = ssub.s32 %s18, %s25
      %s32 = sor.u32 %s30, %s31
      %p33 = scmp.eq.s32.totalorder %s32, 0
      %s35 = sadd.s32 %s34, 1
      %s36 = scalar_select %p33, %s34, %s35
      %p39 = pneg %p33
      %p40 = scmp.eq.s32.totalorder %s10, 1
      %p41 = por %p39, %p40
      %p42 = scmp.ne.s32.totalorder %s34, %s37
      %p43 = scmp.eq.s32.totalorder %s10, 0
      %p44 = por %p42, %p43
      %p45 = scmp.ne.s32.totalorder %s34, %s37
      %p46 = scmp.eq.s32.totalorder %s15, 1
      %p47 = por %p45, %p46
      %p48 = scmp.ne.s32.totalorder %s37, %s38
      %p49 = scmp.eq.s32.totalorder %s15, 0
      %p50 = por %p48, %p49
      %p51 = scmp.ne.s32.totalorder %s37, %s38
      %p52 = scmp.eq.s32.totalorder %s16, 1
      %p53 = por %p51, %p52
      %p55 = scmp.ne.s32.totalorder %s38, %s54
      %p56 = scmp.eq.s32.totalorder %s16, 0
      %p57 = por %p55, %p56
      %s58 = ssub.s32 %s17, %s29
      %p59 = scmp.eq.s32.totalorder %s58, 0
      %s61 = sadd.s32 %s60, 1
      %s62 = scalar_select %p59, %s60, %s61
      %p65 = pneg %p59
      %p66 = scmp.eq.s32.totalorder %s10, 1
      %p67 = por %p65, %p66
      %p68 = scmp.ne.s32.totalorder %s60, %s63
      %p69 = scmp.eq.s32.totalorder %s10, 0
      %p70 = por %p68, %p69
      %p71 = scmp.ne.s32.totalorder %s60, %s63
      %p72 = scmp.eq.s32.totalorder %s15, 1
      %p73 = por %p71, %p72
      %p74 = scmp.ne.s32.totalorder %s63, %s64
      %p75 = scmp.eq.s32.totalorder %s15, 0
      %p76 = por %p74, %p75
      %p77 = scmp.ne.s32.totalorder %s63, %s64
      %p78 = scmp.eq.s32.totalorder %s16, 1
      %p79 = por %p77, %p78
      %p81 = scmp.ne.s32.totalorder %s64, %s80
      %p82 = scmp.eq.s32.totalorder %s16, 0
      %p83 = por %p81, %p82
      %p84 = scmp.le.s32.totalorder 1, %s10
      %p85 = scmp.lt.s32.totalorder %s10, 3
      %p86 = pnand %p84, %p85
      %p87 = pneg %p86
      // Predicated region
      $region9: #{tpu_custom_call.1} parent=5 // pred_check
        _
      $region10: #{tpu_custom_call.1} parent=5 // pred_check_branch
        %89 = sbr.rel (%p86) target = $region12
      $region11: #{tpu_custom_call.1} parent=5 // pred_region
        %s90 = ssub.s32 %s10, 1
      $region12: #{tpu_custom_call.1} parent=5 // pred_fallthru
        _
      %p91 = scmp.lt.s32.totalorder %s10, 2
      // Predicated region
      $region13: #{tpu_custom_call.1} parent=5 // pred_check
        %p92 = pneg %p91
      $region14: #{tpu_custom_call.1} parent=5 // pred_check_branch
        %94 = sbr.rel (%p92) target = $region16
      $region15: #{tpu_custom_call.1} parent=5 // pred_region
        // Predicated region
        $region17: #{tpu_custom_call.1} parent=15 // pred_check
          %p95 = pneg %p44
        $region18: #{tpu_custom_call.1} parent=15 // pred_check_branch
          %97 = sbr.rel (%p95) target = $region20
        $region19: #{tpu_custom_call.1} parent=15 // pred_region
          %s98 = sand.u32 %s34, 1
          %s99 = scalar_lea.sflag [#allocation3], %s98
          %s100 = sand.u32 %s34, 1
          %s101 = smul.addr %s100, 128
          %s102 = scalar_lea.vmem [#allocation2], %s101
          %s103 = smul.u32 2, %s18
          %s105 = ssub.s32 2048, 2048
          %106 = vsyncadd %s99, %s105
          %s107 = smul.addr %s17, 16
          %s108 = sadd.s32 %s103, %s107
          %s109 = smul.addr %s108, 128
          %s110 = scalar_lea.hbm %s0, %s109
          %s111 = sshll.u32 %s102, 4
          %s112 = int_to_ptr.vmem [resolvable:$true] %s111
          %117 = dma.hbm_to_vmem [thread:$0]  %s110, 2048, %s112, %s99, 256, 256, 16
        $region20: #{tpu_custom_call.1} parent=15 // pred_fallthru
          _
      $region16: #{tpu_custom_call.1} parent=5 // pred_fallthru
        _
      %p118 = scmp.le.s32.totalorder 1, %s10
      %p119 = scmp.lt.s32.totalorder %s10, 3
      %p120 = pnand %p118, %p119
      %p121 = pneg %p120
      // Predicated region
      $region21: #{tpu_custom_call.1} parent=5 // pred_check
        _
      $region22: #{tpu_custom_call.1} parent=5 // pred_check_branch
        %123 = sbr.rel (%p120) target = $region24
      $region23: #{tpu_custom_call.1} parent=5 // pred_region
        %s124 = ssub.s32 %s10, 1
        %s125 = sand.u32 %s37, 1
        %s126 = scalar_lea.sflag [#allocation3], %s125
        %s127 = sand.u32 %s37, 1
        %s128 = smul.addr %s127, 128
        %s129 = scalar_lea.vmem [#allocation2], %s128
        // Predicated region
        $region25: #{tpu_custom_call.1} parent=23 // pred_check
          %p130 = pneg %p50
        $region26: #{tpu_custom_call.1} parent=23 // pred_check_branch
          %132 = sbr.rel (%p130) target = $region28
        $region27: #{tpu_custom_call.1} parent=23 // pred_region
          %133 = dma.done %s126, 2048
        $region28: #{tpu_custom_call.1} parent=23 // pred_fallthru
          _
        %s134 = sand.u32 %s37, 1
        %s135 = scalar_lea.sflag [#allocation3], %s134
        %s136 = sand.u32 %s37, 1
        %s137 = smul.addr %s136, 128
        %s138 = scalar_lea.vmem [#allocation2], %s137
        %p139 = pneg %p50
        %p140 = pneg %p47
        %p141 = pneg %p76
        %p142 = pneg %p73
        %p143 = scmp.lt.s32.totalorder %s19, 1
        %s144 = scalar_select %p143, %s19, 1
        %s145 = smul.addr %s144, 8
        %s146 = smul.addr %s145, 8
        %s147 = scalar_lea.vmem %s1, %s146
        %s148 = smul.u32 2, %s20
        %p149 = scmp.lt.s32.totalorder %s19, 1
        %s150 = scalar_select %p149, %s19, 1
        %s151 = smul.addr %s150, 8
        %s152 = smul.addr %s151, 8
        %s153 = scalar_lea.vmem %s1, %s152
        %p154 = scmp.eq.s32.totalorder %s20, 0
        // Predicated region
        $region29: #{tpu_custom_call.1} parent=23 // pred_check
          %p155 = pneg %p154
        $region30: #{tpu_custom_call.1} parent=23 // pred_check_branch
          %157 = sbr.rel (%p155) target = $region32
        $region31: #{tpu_custom_call.1} parent=23 // pred_region
          %vm158 = vcmask 7168
          %159 = vst.msk [vmem:[%s153] sm:$0xff] %vm158, 0.0
          %160 = vst.msk [vmem:[%s153 + $0x8] sm:$0xff] %vm158, 0.0
          %161 = vst.msk [vmem:[%s153 + $0x10] sm:$0xff] %vm158, 0.0
          %162 = vst.msk [vmem:[%s153 + $0x18] sm:$0xff] %vm158, 0.0
          %163 = vst.msk [vmem:[%s153 + $0x20] sm:$0xff] %vm158, 0.0
          %164 = vst.msk [vmem:[%s153 + $0x28] sm:$0xff] %vm158, 0.0
          %165 = vst.msk [vmem:[%s153 + $0x30] sm:$0xff] %vm158, 0.0
          %166 = vst.msk [vmem:[%s153 + $0x38] sm:$0xff] %vm158, 0.0
        $region32: #{tpu_custom_call.1} parent=23 // pred_fallthru
          _
        %v167 = vld [vmem:[%s129] sm:$0xff]
        %v168 = vld [vmem:[%s129 + $0x8] sm:$0xff]
        %v169 = vld [vmem:[%s129 + $0x10] sm:$0xff]
        %v170 = vld [vmem:[%s129 + $0x18] sm:$0xff]
        %v171 = vld [vmem:[%s129 + $0x20] sm:$0xff]
        %v172 = vld [vmem:[%s129 + $0x28] sm:$0xff]
        %v173 = vld [vmem:[%s129 + $0x30] sm:$0xff]
        %v174 = vld [vmem:[%s129 + $0x38] sm:$0xff]
        %v175 = vld [vmem:[%s129 + $0x40] sm:$0xff]
        %v176 = vld [vmem:[%s129 + $0x48] sm:$0xff]
        %v177 = vld [vmem:[%s129 + $0x50] sm:$0xff]
        %v178 = vld [vmem:[%s129 + $0x58] sm:$0xff]
        %v179 = vld [vmem:[%s129 + $0x60] sm:$0xff]
        %v180 = vld [vmem:[%s129 + $0x68] sm:$0xff]
        %v181 = vld [vmem:[%s129 + $0x70] sm:$0xff]
        %v182 = vld [vmem:[%s129 + $0x78] sm:$0xff]
        %v183 = vld [vmem:[%s153] sm:$0xff]
        %v184 = vld [vmem:[%s153 + $0x8] sm:$0xff]
        %v185 = vld [vmem:[%s153 + $0x10] sm:$0xff]
        %v186 = vld [vmem:[%s153 + $0x18] sm:$0xff]
        %v187 = vld [vmem:[%s153 + $0x20] sm:$0xff]
        %v188 = vld [vmem:[%s153 + $0x28] sm:$0xff]
        %v189 = vld [vmem:[%s153 + $0x30] sm:$0xff]
        %v190 = vld [vmem:[%s153 + $0x38] sm:$0xff]
        %v191 = vadd.f32 %v167, %v168
        %192 = vadd.xlane.f32.xlu0 %v191
        %v193 = vpop.xlane.xlu0 %192
        %v194 = vadd.f32 %v169, %v170
        %195 = vadd.xlane.f32.xlu0 %v194
        %v196 = vpop.xlane.xlu0 %195
        %v197 = vadd.f32 %v171, %v172
        %198 = vadd.xlane.f32.xlu0 %v197
        %v199 = vpop.xlane.xlu0 %198
        %v200 = vadd.f32 %v173, %v174
        %201 = vadd.xlane.f32.xlu0 %v200
        %v202 = vpop.xlane.xlu0 %201
        %v203 = vadd.f32 %v175, %v176
        %204 = vadd.xlane.f32.xlu0 %v203
        %v205 = vpop.xlane.xlu0 %204
        %v206 = vadd.f32 %v177, %v178
        %207 = vadd.xlane.f32.xlu0 %v206
        %v208 = vpop.xlane.xlu0 %207
        %v209 = vadd.f32 %v179, %v180
        %210 = vadd.xlane.f32.xlu0 %v209
        %v211 = vpop.xlane.xlu0 %210
        %v212 = vadd.f32 %v181, %v182
        %213 = vadd.xlane.f32.xlu0 %v212
        %v214 = vpop.xlane.xlu0 %213
        %v215 = vadd.f32 %v183, %v193
        %v216 = vadd.f32 %v184, %v196
        %v217 = vadd.f32 %v185, %v199
        %v218 = vadd.f32 %v186, %v202
        %v219 = vadd.f32 %v187, %v205
        %v220 = vadd.f32 %v188, %v208
        %v221 = vadd.f32 %v189, %v211
        %v222 = vadd.f32 %v190, %v214
        %vm223 = vcmask 7168
        %224 = vst.msk [vmem:[%s153] sm:$0xff] %vm223, %v215
        %225 = vst.msk [vmem:[%s153 + $0x8] sm:$0xff] %vm223, %v216
        %226 = vst.msk [vmem:[%s153 + $0x10] sm:$0xff] %vm223, %v217
        %227 = vst.msk [vmem:[%s153 + $0x18] sm:$0xff] %vm223, %v218
        %228 = vst.msk [vmem:[%s153 + $0x20] sm:$0xff] %vm223, %v219
        %229 = vst.msk [vmem:[%s153 + $0x28] sm:$0xff] %vm223, %v220
        %230 = vst.msk [vmem:[%s153 + $0x30] sm:$0xff] %vm223, %v221
        %231 = vst.msk [vmem:[%s153 + $0x38] sm:$0xff] %vm223, %v222
        %p232 = scmp.lt.s32.totalorder %s19, 1
        %s233 = scalar_select %p232, %s19, 1
        %s234 = smul.addr %s233, 8
        %s235 = smul.addr %s234, 8
        %s236 = scalar_lea.vmem %s1, %s235
        // Predicated region
        $region33: #{tpu_custom_call.1} parent=23 // pred_check
          %p237 = pneg %p73
        $region34: #{tpu_custom_call.1} parent=23 // pred_check_branch
          %239 = sbr.rel (%p237) target = $region36
        $region35: #{tpu_custom_call.1} parent=23 // pred_region
          _
        $region36: #{tpu_custom_call.1} parent=23 // pred_fallthru
          _
      $region24: #{tpu_custom_call.1} parent=5 // pred_fallthru
        _
      %p240 = scmp.le.s32.totalorder 2, %s10
      // Predicated region
      $region37: #{tpu_custom_call.1} parent=5 // pred_check
        %p241 = pneg %p240
      $region38: #{tpu_custom_call.1} parent=5 // pred_check_branch
        %243 = sbr.rel (%p241) target = $region40
      $region39: #{tpu_custom_call.1} parent=5 // pred_region
        %s244 = ssub.s32 %s10, 2
        // Predicated region
        $region41: #{tpu_custom_call.1} parent=39 // pred_check
          %p245 = pneg %p79
        $region42: #{tpu_custom_call.1} parent=39 // pred_check_branch
          %247 = sbr.rel (%p245) target = $region44
        $region43: #{tpu_custom_call.1} parent=39 // pred_region
          %p248 = scmp.lt.s32.totalorder %s21, 1
          %s249 = scalar_select %p248, %s21, 1
          %s250 = smul.addr %s249, 8
          %s251 = smul.addr %s250, 8
          %s252 = scalar_lea.vmem %s1, %s251
        $region44: #{tpu_custom_call.1} parent=39 // pred_fallthru
          _
      $region40: #{tpu_custom_call.1} parent=5 // pred_fallthru
        _
    $region6: #{tpu_custom_call.1} parent=1 // loop_footer
      %s14 = sadd.s32 1, %s10
    $region7: #{tpu_custom_call.1} parent=1 // loop_footer_branch
      %9 = sbr.rel target = $region3
    $region8: #{tpu_custom_call.1} parent=1 // loop_exit
      _
    %253 = vsyncpa [#allocation3], 1
    %s254 = scalar_lea.sflag [#allocation3], 1
    %255 = vsyncpa %s254, 1

</llo_original>
